<compile_context>
chip_gen: v6e
topology: v6e:2x2x1
jax: 0.10.0
libtpu: 0.0.40
codegen_flags: <defaults>
</compile_context>

<pallas_src>
import jax
import jax.numpy as jnp
from jax.experimental import pallas as pl
from jax.experimental.pallas import tpu as pltpu


def _simi2prob_kernel(a_ref, simi_ref, brow_ref, out_ref):
    # a_ref: (1,) f32 in SMEM (scalar prefetch) -> a = (w0 - w1)/tau
    a = a_ref[0]
    simi = simi_ref[...].astype(jnp.float32)      # (tile_n, tile_m)
    brow = brow_ref[...]                          # (tile_n, 1) broadcasts over lanes
    out_ref[...] = (a * simi + brow).astype(out_ref.dtype)


def _round_up(x, m):
    return (x + m - 1) // m * m


def _choose_tiles(N, M, max_tile_bytes=4 << 20):
    """Pick (tile_n, tile_m). Keep last dim lane-dense; cap one f32 tile at
    ~4 MiB so double-buffered in+out tiles stay well inside every chip's
    scoped VMEM (v5e 16 MiB default, v7x 64 MiB physical)."""
    if M <= 8192:
        tile_m = M                      # full row: always a legal block dim
    else:
        tile_m = 8192 if M % 8192 == 0 else 4096
    row_bytes = tile_m * 4
    tile_n = max(8, (max_tile_bytes // row_bytes) // 8 * 8)
    tile_n = min(tile_n, _round_up(N, 8))
    # Ensure >= 2 grid steps when possible so both v7x TensorCores get work.
    if pl.cdiv(N, tile_n) * pl.cdiv(M, tile_m) < 2 and N > 8:
        tile_n = max(8, _round_up(pl.cdiv(N, 2), 8))
    return tile_n, tile_m


def simi2prob_forward(simi_mtx, max_simi_arr, weight, bias, tau,
                      *, out_dtype=jnp.float32):
    """simi_mtx: (N, M), max_simi_arr: (N,), weight: (1, 2) (nn.Linear(2,1).weight),
    bias: (1,), tau: scalar. Returns logits (N, M) in out_dtype (default f32).
    Matches torch.squeeze for N, M > 1."""
    N, M = simi_mtx.shape

    simi_mtx = simi_mtx.astype(jnp.float32)
    w0 = weight[0, 0].astype(jnp.float32)
    w1 = weight[0, 1].astype(jnp.float32)
    b = bias[0].astype(jnp.float32)
    inv_tau = jnp.float32(1.0) / jnp.asarray(tau, jnp.float32)

    # Host-side folding: kernel computes a*simi + bias_row per element.
    a = jnp.reshape((w0 - w1) * inv_tau, (1,))
    bias_row = ((w1 * max_simi_arr.astype(jnp.float32) + b) * inv_tau
                ).reshape(N, 1)

    tile_n, tile_m = _choose_tiles(N, M)
    grid = (pl.cdiv(N, tile_n), pl.cdiv(M, tile_m))

    out_itemsize = jnp.dtype(out_dtype).itemsize
    in_tile_bytes = tile_n * tile_m * 4
    out_tile_bytes = tile_n * tile_m * out_itemsize
    brow_tile_bytes = tile_n * 4
    # BlockSpec double-buffers every operand; add headroom.
    vmem_needed = 2 * (in_tile_bytes + out_tile_bytes + brow_tile_bytes) + (2 << 20)
    vmem_limit = min(max(vmem_needed, 16 << 20), 48 << 20)

    return pl.pallas_call(
        _simi2prob_kernel,
        out_shape=jax.ShapeDtypeStruct((N, M), out_dtype),
        grid_spec=pltpu.PrefetchScalarGridSpec(
            num_scalar_prefetch=1,                    # `a` -> SMEM
            grid=grid,
            in_specs=[
                pl.BlockSpec((tile_n, tile_m), lambda i, j, a_ref: (i, j)),
                pl.BlockSpec((tile_n, 1),      lambda i, j, a_ref: (i, 0)),
            ],
            out_specs=pl.BlockSpec((tile_n, tile_m), lambda i, j, a_ref: (i, j)),
        ),
        compiler_params=pltpu.CompilerParams(
            dimension_semantics=("parallel", "parallel"),
            vmem_limit_bytes=int(vmem_limit),
        ),
    )(a, simi_mtx, bias_row)


def reference_forward(simi_mtx, max_simi_arr, weight, bias, tau):
    offset = max_simi_arr[:, None] - simi_mtx
    features = jnp.stack([simi_mtx, offset], axis=-1)        # (N, M, 2)
    logits = (features @ weight.T + bias) / tau              # (N, M, 1)
    return jnp.squeeze(logits)


if __name__ == "__main__":
    key = jax.random.PRNGKey(0)
    k_simi, k_w, k_b = jax.random.split(key, 3)

    N, M = 256, 512
    fea_num = 2

    simi_mtx = jax.random.uniform(k_simi, (N, M), dtype=jnp.float32)
    max_simi_arr = jnp.max(simi_mtx, axis=1)                  # (N,)

    # Deterministic "nn.Linear(fea_num, 1)" parameters + tau.
    weight = jax.random.normal(k_w, (1, fea_num), dtype=jnp.float32) * 0.5
    bias = jax.random.normal(k_b, (1,), dtype=jnp.float32) * 0.1
    tau = jnp.float32(0.7)

    out = simi2prob_forward(simi_mtx, max_simi_arr, weight, bias, tau)
    out = jax.block_until_ready(out)

    ref = reference_forward(simi_mtx, max_simi_arr, weight, bias, tau)
    assert out.shape == (N, M)
    assert jnp.allclose(out, ref, atol=1e-5, rtol=1e-5), "mismatch vs reference"

    print("KERNEL_OK")
</pallas_src>

<mosaic_0001>
module attributes {stable_mosaic.version = 11 : i64} {
  func.func @_simi2prob_kernel(%arg0: i32, %arg1: i32, %arg2: memref<1xf32, #tpu.memory_space<smem>>, %arg3: memref<128x512xf32, #tpu.memory_space<vmem>>, %arg4: memref<128x1xf32, #tpu.memory_space<vmem>>, %arg5: memref<128x512xf32, #tpu.memory_space<vmem>>) attributes {dimension_semantics = [#tpu.dimension_semantics<parallel>, #tpu.dimension_semantics<parallel>], iteration_bounds = array<i64: 2, 1>, scalar_prefetch = 1 : i64, scratch_operands = 0 : i64, tpu.core_type = #tpu.core_type<tc>, window_params = [{transform_indices = @transform_0, window_bounds = array<i64: 128, 512>}, {transform_indices = @transform_1, window_bounds = array<i64: 128, 1>}, {transform_indices = @transform_2, window_bounds = array<i64: 128, 512>}]} {
    %c0 = arith.constant 0 : index
    %0 = memref.load %arg2[%c0] : memref<1xf32, #tpu.memory_space<smem>>
    %c0_0 = arith.constant 0 : index
    %c0_1 = arith.constant 0 : index
    %1 = vector.load %arg3[%c0_0, %c0_1] : memref<128x512xf32, #tpu.memory_space<vmem>>, vector<128x512xf32>
    %c0_2 = arith.constant 0 : index
    %c0_3 = arith.constant 0 : index
    %2 = vector.load %arg4[%c0_2, %c0_3] : memref<128x1xf32, #tpu.memory_space<vmem>>, vector<128x1xf32>
    %3 = vector.broadcast %0 : f32 to vector<128x512xf32>
    %4 = arith.mulf %3, %1 : vector<128x512xf32>
    %5 = vector.broadcast %2 : vector<128x1xf32> to vector<128x512xf32>
    %6 = arith.addf %4, %5 : vector<128x512xf32>
    %c0_4 = arith.constant 0 : index
    %c0_5 = arith.constant 0 : index
    %7 = vector.load %arg5[%c0_4, %c0_5] : memref<128x512xf32, #tpu.memory_space<vmem>>, vector<128x512xf32>
    tpu.vector_store %arg5[%c0_4, %c0_5], %6 {strides = array<i32>} : memref<128x512xf32, #tpu.memory_space<vmem>>, vector<128x512xf32>,
    return
  }
  func.func @transform_0(%arg0: i32, %arg1: i32, %arg2: memref<1xf32, #tpu.memory_space<smem>>) -> (i32, i32) {
    %c0_i32 = arith.constant 0 : i32
    return %arg0, %arg1 : i32, i32
  }
  func.func @transform_1(%arg0: i32, %arg1: i32, %arg2: memref<1xf32, #tpu.memory_space<smem>>) -> (i32, i32) {
    %c0_i32 = arith.constant 0 : i32
    %c0_i32_0 = arith.constant 0 : i32
    return %arg0, %c0_i32 : i32, i32
  }
  func.func @transform_2(%arg0: i32, %arg1: i32, %arg2: memref<1xf32, #tpu.memory_space<smem>>) -> (i32, i32) {
    %c0_i32 = arith.constant 0 : i32
    return %arg0, %arg1 : i32, i32
  }
}

</mosaic_0001>

<llo_original>
// kernel: tpu_custom_call.1
$region0: #{tpu_custom_call.1}
  #allocation0 [shape = 'u32[]', space=smem, size = 0x4, offset = 0x4, fixed_abs, tag = 'smem constant byte address 0x4 - core index']
  #allocation1 [shape = 'u32[144,128]{1,0:T(1,128)}', space=vmem, size = 0x12000, scoped, tag = 'internal scratch']
  #allocation2 [shape = 's32[1]{0}', space=sflag, size = 0x4, scoped, tag = 'scoped memory for tpu_custom_call.1']
  #allocation3 [shape = 'f32[1]{0:T(128)S(6)}', space=smem, size = 0x200, scoped, tag = 'prefetched SMEM operand 0']
  %s0 = inlined_call_operand.<no memory space> [shape: f32[1], index: 0, kind: input, shape index: {}]
  %s1 = inlined_call_operand.hbm [shape: f32[256,512], index: 1, kind: input, shape index: {}]
  %s2 = inlined_call_operand.vmem [shape: f32[256,1], index: 2, kind: input, shape index: {}]
  %s3 = inlined_call_operand.hbm [shape: f32[256,512], index: 3, kind: output, shape index: {}]
  %s4 = sld [smem:[#allocation0]]
  $region45: #{tpu_custom_call.1} parent=0
    _
  %s6 = ssub.s32 1, %s4
  %s7 = scalar_select 0, %s6, %s4
  %8 = sst [smem:[#allocation3]] %s0
  $region1: #{tpu_custom_call.1} parent=0
    #allocation4 [shape = 'u8[524288]{0}', space=vmem, size = 0x80000, scoped, tag = 'input window, operand 1']
    #allocation5 [shape = 's32[2]{0}', space=sflag, size = 0x8, scoped, tag = 'scoped memory for tpu_custom_call.1']
    #allocation6 [shape = 's32[2]{0}', space=sflag, size = 0x8, scoped, tag = 'scoped memory for tpu_custom_call.1']
    #allocation7 [shape = 'u8[524288]{0}', space=vmem, size = 0x80000, scoped, tag = 'output window, operand 0']
    %9 = vsyncpa [#allocation5], 0
    %s10 = scalar_lea.sflag [#allocation5], 1
    %11 = vsyncpa %s10, 0
    %12 = vsyncpa [#allocation6], 0
    %s13 = scalar_lea.sflag [#allocation6], 1
    %14 = vsyncpa %s13, 0
    loop: start=0, step=1, limit=4
    $region2: #{tpu_custom_call.1} parent=1 // loop_pre_header
      _
    $region3: #{tpu_custom_call.1} parent=1 // loop_header
      %s16 = sphi 0, %s20
      %p17 = scmp.ge.s32.totalorder %s16, 4
      %s23 = sphi 0, %s35
      %s24 = sphi 0, %s31
      %s25 = sphi 0, %s23
      %s26 = sphi 0, %s24
      %s27 = sphi 0, %s25
      %s28 = sphi 0, %s26
      %s40 = sphi 0, %s42
      %s43 = sphi 0, %s40
      %s44 = sphi 0, %s43
      %s60 = sphi 0, %s44
      %s66 = sphi 0, %s68
      %s69 = sphi 0, %s66
      %s70 = sphi 0, %s69
      %s86 = sphi 0, %s70
      %s94 = sphi 0, %s96
      %s97 = sphi 0, %s94
      %s98 = sphi 0, %s97
      %s114 = sphi 0, %s98
    $region4: #{tpu_custom_call.1} parent=1 // loop_header_branch
      %19 = sbr.rel (%p17) target = $region8
    $region5: #{tpu_custom_call.1} parent=1 // loop_body
      %s21 = ssub.s32 %s16, 1
      %s22 = ssub.s32 %s16, 2
      %s29 = sadd.s32 1, %s24
      %p30 = scmp.ge.s32.totalorder %s29, 1
      %s31 = scalar_select %p30, 0, %s29
      %s32 = sadd.s32 1, %s23
      %s33 = scalar_select %p30, %s32, %s23
      %p34 = scmp.ge.s32.totalorder %s33, 2
      %s35 = scalar_select %p34, 0, %s33
      %s36 = ssub.s32 %s23, %s35
      %s37 = ssub.s32 %s24, %s31
      %s38 = sor.u32 %s36, %s37
      %p39 = scmp.eq.s32.totalorder %s38, 0
      %s41 = sadd.s32 %s40, 1
      %s42 = scalar_select %p39, %s40, %s41
      %p45 = pneg %p39
      %p46 = scmp.eq.s32.totalorder %s16, 1
      %p47 = por %p45, %p46
      %p48 = scmp.ne.s32.totalorder %s40, %s43
      %p49 = scmp.eq.s32.totalorder %s16, 0
      %p50 = por %p48, %p49
      %p51 = scmp.ne.s32.totalorder %s40, %s43
      %p52 = scmp.eq.s32.totalorder %s21, 1
      %p53 = por %p51, %p52
      %p54 = scmp.ne.s32.totalorder %s43, %s44
      %p55 = scmp.eq.s32.totalorder %s21, 0
      %p56 = por %p54, %p55
      %p57 = scmp.ne.s32.totalorder %s43, %s44
      %p58 = scmp.eq.s32.totalorder %s22, 1
      %p59 = por %p57, %p58
      %p61 = scmp.ne.s32.totalorder %s44, %s60
      %p62 = scmp.eq.s32.totalorder %s22, 0
      %p63 = por %p61, %p62
      %s64 = ssub.s32 %s23, %s35
      %p65 = scmp.eq.s32.totalorder %s64, 0
      %s67 = sadd.s32 %s66, 1
      %s68 = scalar_select %p65, %s66, %s67
      %p71 = pneg %p65
      %p72 = scmp.eq.s32.totalorder %s16, 1
      %p73 = por %p71, %p72
      %p74 = scmp.ne.s32.totalorder %s66, %s69
      %p75 = scmp.eq.s32.totalorder %s16, 0
      %p76 = por %p74, %p75
      %p77 = scmp.ne.s32.totalorder %s66, %s69
      %p78 = scmp.eq.s32.totalorder %s21, 1
      %p79 = por %p77, %p78
      %p80 = scmp.ne.s32.totalorder %s69, %s70
      %p81 = scmp.eq.s32.totalorder %s21, 0
      %p82 = por %p80, %p81
      %p83 = scmp.ne.s32.totalorder %s69, %s70
      %p84 = scmp.eq.s32.totalorder %s22, 1
      %p85 = por %p83, %p84
      %p87 = scmp.ne.s32.totalorder %s70, %s86
      %p88 = scmp.eq.s32.totalorder %s22, 0
      %p89 = por %p87, %p88
      %s90 = ssub.s32 %s23, %s35
      %s91 = ssub.s32 %s24, %s31
      %s92 = sor.u32 %s90, %s91
      %p93 = scmp.eq.s32.totalorder %s92, 0
      %s95 = sadd.s32 %s94, 1
      %s96 = scalar_select %p93, %s94, %s95
      %p99 = pneg %p93
      %p100 = scmp.eq.s32.totalorder %s16, 1
      %p101 = por %p99, %p100
      %p102 = scmp.ne.s32.totalorder %s94, %s97
      %p103 = scmp.eq.s32.totalorder %s16, 0
      %p104 = por %p102, %p103
      %p105 = scmp.ne.s32.totalorder %s94, %s97
      %p106 = scmp.eq.s32.totalorder %s21, 1
      %p107 = por %p105, %p106
      %p108 = scmp.ne.s32.totalorder %s97, %s98
      %p109 = scmp.eq.s32.totalorder %s21, 0
      %p110 = por %p108, %p109
      %p111 = scmp.ne.s32.totalorder %s97, %s98
      %p112 = scmp.eq.s32.totalorder %s22, 1
      %p113 = por %p111, %p112
      %p115 = scmp.ne.s32.totalorder %s98, %s114
      %p116 = scmp.eq.s32.totalorder %s22, 0
      %p117 = por %p115, %p116
      %p118 = scmp.le.s32.totalorder 1, %s16
      %p119 = scmp.lt.s32.totalorder %s16, 3
      %p120 = pnand %p118, %p119
      %p121 = pneg %p120
      // Predicated region
      $region9: #{tpu_custom_call.1} parent=5 // pred_check
        _
      $region10: #{tpu_custom_call.1} parent=5 // pred_check_branch
        %123 = sbr.rel (%p120) target = $region12
      $region11: #{tpu_custom_call.1} parent=5 // pred_region
        %s124 = ssub.s32 %s16, 1
      $region12: #{tpu_custom_call.1} parent=5 // pred_fallthru
        _
      %p125 = scmp.lt.s32.totalorder %s16, 2
      // Predicated region
      $region13: #{tpu_custom_call.1} parent=5 // pred_check
        %p126 = pneg %p125
      $region14: #{tpu_custom_call.1} parent=5 // pred_check_branch
        %128 = sbr.rel (%p126) target = $region16
      $region15: #{tpu_custom_call.1} parent=5 // pred_region
        // Predicated region
        $region17: #{tpu_custom_call.1} parent=15 // pred_check
          %p129 = pneg %p50
        $region18: #{tpu_custom_call.1} parent=15 // pred_check_branch
          %131 = sbr.rel (%p129) target = $region20
        $region19: #{tpu_custom_call.1} parent=15 // pred_region
          %s132 = sand.u32 %s40, 1
          %s133 = scalar_lea.sflag [#allocation5], %s132
          %s134 = sand.u32 %s40, 1
          %s135 = smul.addr %s134, 512
          %s136 = scalar_lea.vmem [#allocation4], %s135
          %s137 = smul.u32 16, %s23
          %s138 = smul.u32 4, %s24
          %s140 = ssub.s32 8192, 8192
          %141 = vsyncadd %s133, %s140
          %s142 = smul.addr %s137, 4
          %s143 = sadd.s32 %s138, %s142
          %s144 = smul.addr %s143, 128
          %s145 = scalar_lea.hbm %s1, %s144
          %s146 = sshll.u32 %s136, 4
          %s147 = int_to_ptr.vmem [resolvable:$true] %s146
          %152 = dma.hbm_to_vmem [thread:$0]  %s145, 8192, %s147, %s133, 512, 512, 32
        $region20: #{tpu_custom_call.1} parent=15 // pred_fallthru
          _
        // Predicated region
        $region21: #{tpu_custom_call.1} parent=15 // pred_check
          %p153 = pneg %p76
        $region22: #{tpu_custom_call.1} parent=15 // pred_check_branch
          %155 = sbr.rel (%p153) target = $region24
        $region23: #{tpu_custom_call.1} parent=15 // pred_region
          %s156 = smul.u32 16, %s23
          %p157 = scmp.lt.s32.totalorder %s156, 31
          %s158 = scalar_select %p157, %s156, 31
          %s159 = smul.addr %s158, 8
          %s160 = scalar_lea.vmem %s2, %s159
          %s161 = smul.u32 16, %s23
        $region24: #{tpu_custom_call.1} parent=15 // pred_fallthru
          _
      $region16: #{tpu_custom_call.1} parent=5 // pred_fallthru
        _
      %p162 = scmp.le.s32.totalorder 1, %s16
      %p163 = scmp.lt.s32.totalorder %s16, 3
      %p164 = pnand %p162, %p163
      %p165 = pneg %p164
      // Predicated region
      $region25: #{tpu_custom_call.1} parent=5 // pred_check
        _
      $region26: #{tpu_custom_call.1} parent=5 // pred_check_branch
        %167 = sbr.rel (%p164) target = $region28
      $region27: #{tpu_custom_call.1} parent=5 // pred_region
        %s168 = ssub.s32 %s16, 1
        %s169 = sand.u32 %s43, 1
        %s170 = scalar_lea.sflag [#allocation5], %s169
        %s171 = sand.u32 %s43, 1
        %s172 = smul.addr %s171, 512
        %s173 = scalar_lea.vmem [#allocation4], %s172
        // Predicated region
        $region29: #{tpu_custom_call.1} parent=27 // pred_check
          %p174 = pneg %p56
        $region30: #{tpu_custom_call.1} parent=27 // pred_check_branch
          %176 = sbr.rel (%p174) target = $region32
        $region31: #{tpu_custom_call.1} parent=27 // pred_region
          %177 = dma.done %s170, 8192
        $region32: #{tpu_custom_call.1} parent=27 // pred_fallthru
          _
        %s178 = sand.u32 %s43, 1
        %s179 = scalar_lea.sflag [#allocation5], %s178
        %s180 = sand.u32 %s43, 1
        %s181 = smul.addr %s180, 512
        %s182 = scalar_lea.vmem [#allocation4], %s181
        %p183 = pneg %p56
        %p184 = pneg %p53
        %s185 = smul.u32 16, %s25
        %p186 = scmp.lt.s32.totalorder %s185, 31
        %s187 = scalar_select %p186, %s185, 31
        %s188 = smul.addr %s187, 8
        %s189 = scalar_lea.vmem %s2, %s188
        %p190 = pneg %p82
        %p191 = pneg %p79
        %p192 = pneg %p110
        %p193 = pneg %p107
        %s194 = sand.u32 %s97, 1
        %s195 = scalar_lea.sflag [#allocation6], %s194
        %s196 = sand.u32 %s97, 1
        %s197 = smul.addr %s196, 512
        %s198 = scalar_lea.vmem [#allocation7], %s197
        %s199 = smul.u32 16, %s25
        %s200 = smul.u32 4, %s26
        %s201 = smul.u32 16, %s25
        %p202 = scmp.lt.s32.totalorder %s201, 31
        %s203 = scalar_select %p202, %s201, 31
        %s204 = smul.addr %s203, 8
        %s205 = scalar_lea.vmem %s2, %s204
        %s206 = smul.u32 16, %s25
        %s207 = smul.u32 16, %s25
        %s208 = smul.u32 4, %s26
        %s209 = sld [smem:[#allocation3]]
        %v210 = vld [vmem:[%s173] sm:$0xff]
        %v211 = vld [vmem:[%s173 + $0x8] sm:$0xff]
        %v212 = vld [vmem:[%s173 + $0x10] sm:$0xff]
        %v213 = vld [vmem:[%s173 + $0x18] sm:$0xff]
        %v214 = vld [vmem:[%s173 + $0x20] sm:$0xff]
        %v215 = vld [vmem:[%s173 + $0x28] sm:$0xff]
        %v216 = vld [vmem:[%s173 + $0x30] sm:$0xff]
        %v217 = vld [vmem:[%s173 + $0x38] sm:$0xff]
        %v218 = vld [vmem:[%s173 + $0x40] sm:$0xff]
        %v219 = vld [vmem:[%s173 + $0x48] sm:$0xff]
        %v220 = vld [vmem:[%s173 + $0x50] sm:$0xff]
        %v221 = vld [vmem:[%s173 + $0x58] sm:$0xff]
        %v222 = vld [vmem:[%s173 + $0x60] sm:$0xff]
        %v223 = vld [vmem:[%s173 + $0x68] sm:$0xff]
        %v224 = vld [vmem:[%s173 + $0x70] sm:$0xff]
        %v225 = vld [vmem:[%s173 + $0x78] sm:$0xff]
        %v226 = vld [vmem:[%s173 + $0x80] sm:$0xff]
        %v227 = vld [vmem:[%s173 + $0x88] sm:$0xff]
        %v228 = vld [vmem:[%s173 + $0x90] sm:$0xff]
        %v229 = vld [vmem:[%s173 + $0x98] sm:$0xff]
        %v230 = vld [vmem:[%s173 + $0xa0] sm:$0xff]
        %v231 = vld [vmem:[%s173 + $0xa8] sm:$0xff]
        %v232 = vld [vmem:[%s173 + $0xb0] sm:$0xff]
        %v233 = vld [vmem:[%s173 + $0xb8] sm:$0xff]
        %v234 = vld [vmem:[%s173 + $0xc0] sm:$0xff]
        %v235 = vld [vmem:[%s173 + $0xc8] sm:$0xff]
        %v236 = vld [vmem:[%s173 + $0xd0] sm:$0xff]
        %v237 = vld [vmem:[%s173 + $0xd8] sm:$0xff]
        %v238 = vld [vmem:[%s173 + $0xe0] sm:$0xff]
        %v239 = vld [vmem:[%s173 + $0xe8] sm:$0xff]
        %v240 = vld [vmem:[%s173 + $0xf0] sm:$0xff]
        %v241 = vld [vmem:[%s173 + $0xf8] sm:$0xff]
        %v242 = vld [vmem:[%s173 + $0x100] sm:$0xff]
        %v243 = vld [vmem:[%s173 + $0x108] sm:$0xff]
        %v244 = vld [vmem:[%s173 + $0x110] sm:$0xff]
        %v245 = vld [vmem:[%s173 + $0x118] sm:$0xff]
        %v246 = vld [vmem:[%s173 + $0x120] sm:$0xff]
        %v247 = vld [vmem:[%s173 + $0x128] sm:$0xff]
        %v248 = vld [vmem:[%s173 + $0x130] sm:$0xff]
        %v249 = vld [vmem:[%s173 + $0x138] sm:$0xff]
        %v250 = vld [vmem:[%s173 + $0x140] sm:$0xff]
        %v251 = vld [vmem:[%s173 + $0x148] sm:$0xff]
        %v252 = vld [vmem:[%s173 + $0x150] sm:$0xff]
        %v253 = vld [vmem:[%s173 + $0x158] sm:$0xff]
        %v254 = vld [vmem:[%s173 + $0x160] sm:$0xff]
        %v255 = vld [vmem:[%s173 + $0x168] sm:$0xff]
        %v256 = vld [vmem:[%s173 + $0x170] sm:$0xff]
        %v257 = vld [vmem:[%s173 + $0x178] sm:$0xff]
        %v258 = vld [vmem:[%s173 + $0x180] sm:$0xff]
        %v259 = vld [vmem:[%s173 + $0x188] sm:$0xff]
        %v260 = vld [vmem:[%s173 + $0x190] sm:$0xff]
        %v261 = vld [vmem:[%s173 + $0x198] sm:$0xff]
        %v262 = vld [vmem:[%s173 + $0x1a0] sm:$0xff]
        %v263 = vld [vmem:[%s173 + $0x1a8] sm:$0xff]
        %v264 = vld [vmem:[%s173 + $0x1b0] sm:$0xff]
        %v265 = vld [vmem:[%s173 + $0x1b8] sm:$0xff]
        %v266 = vld [vmem:[%s173 + $0x1c0] sm:$0xff]
        %v267 = vld [vmem:[%s173 + $0x1c8] sm:$0xff]
        %v268 = vld [vmem:[%s173 + $0x1d0] sm:$0xff]
        %v269 = vld [vmem:[%s173 + $0x1d8] sm:$0xff]
        %v270 = vld [vmem:[%s173 + $0x1e0] sm:$0xff]
        %v271 = vld [vmem:[%s173 + $0x1e8] sm:$0xff]
        %v272 = vld [vmem:[%s173 + $0x1f0] sm:$0xff]
        %v273 = vld [vmem:[%s173 + $0x1f8] sm:$0xff]
        %v274 = vld [vmem:[%s205] sm:$0xff]
        %v275 = vld [vmem:[%s205 + $0x8] sm:$0xff]
        %v276 = vld [vmem:[%s205 + $0x10] sm:$0xff]
        %v277 = vld [vmem:[%s205 + $0x18] sm:$0xff]
        %v278 = vld [vmem:[%s205 + $0x20] sm:$0xff]
        %v279 = vld [vmem:[%s205 + $0x28] sm:$0xff]
        %v280 = vld [vmem:[%s205 + $0x30] sm:$0xff]
        %v281 = vld [vmem:[%s205 + $0x38] sm:$0xff]
        %v282 = vld [vmem:[%s205 + $0x40] sm:$0xff]
        %v283 = vld [vmem:[%s205 + $0x48] sm:$0xff]
        %v284 = vld [vmem:[%s205 + $0x50] sm:$0xff]
        %v285 = vld [vmem:[%s205 + $0x58] sm:$0xff]
        %v286 = vld [vmem:[%s205 + $0x60] sm:$0xff]
        %v287 = vld [vmem:[%s205 + $0x68] sm:$0xff]
        %v288 = vld [vmem:[%s205 + $0x70] sm:$0xff]
        %v289 = vld [vmem:[%s205 + $0x78] sm:$0xff]
        %v290 = vstv %s209
        %v291 = vmul.f32 %v290, %v210
        %v292 = vmul.f32 %v290, %v211
        %v293 = vmul.f32 %v290, %v212
        %v294 = vmul.f32 %v290, %v213
        %v295 = vmul.f32 %v290, %v214
        %v296 = vmul.f32 %v290, %v215
        %v297 = vmul.f32 %v290, %v216
        %v298 = vmul.f32 %v290, %v217
        %v299 = vmul.f32 %v290, %v218
        %v300 = vmul.f32 %v290, %v219
        %v301 = vmul.f32 %v290, %v220
        %v302 = vmul.f32 %v290, %v221
        %v303 = vmul.f32 %v290, %v222
        %v304 = vmul.f32 %v290, %v223
        %v305 = vmul.f32 %v290, %v224
        %v306 = vmul.f32 %v290, %v225
        %v307 = vmul.f32 %v290, %v226
        %v308 = vmul.f32 %v290, %v227
        %v309 = vmul.f32 %v290, %v228
        %v310 = vmul.f32 %v290, %v229
        %v311 = vmul.f32 %v290, %v230
        %v312 = vmul.f32 %v290, %v231
        %v313 = vmul.f32 %v290, %v232
        %v314 = vmul.f32 %v290, %v233
        %v315 = vmul.f32 %v290, %v234
        %v316 = vmul.f32 %v290, %v235
        %v317 = vmul.f32 %v290, %v236
        %v318 = vmul.f32 %v290, %v237
        %v319 = vmul.f32 %v290, %v238
        %v320 = vmul.f32 %v290, %v239
        %v321 = vmul.f32 %v290, %v240
        %v322 = vmul.f32 %v290, %v241
        %v323 = vmul.f32 %v290, %v242
        %v324 = vmul.f32 %v290, %v243
        %v325 = vmul.f32 %v290, %v244
        %v326 = vmul.f32 %v290, %v245
        %v327 = vmul.f32 %v290, %v246
        %v328 = vmul.f32 %v290, %v247
        %v329 = vmul.f32 %v290, %v248
        %v330 = vmul.f32 %v290, %v249
        %v331 = vmul.f32 %v290, %v250
        %v332 = vmul.f32 %v290, %v251
        %v333 = vmul.f32 %v290, %v252
        %v334 = vmul.f32 %v290, %v253
        %v335 = vmul.f32 %v290, %v254
        %v336 = vmul.f32 %v290, %v255
        %v337 = vmul.f32 %v290, %v256
        %v338 = vmul.f32 %v290, %v257
        %v339 = vmul.f32 %v290, %v258
        %v340 = vmul.f32 %v290, %v259
        %v341 = vmul.f32 %v290, %v260
        %v342 = vmul.f32 %v290, %v261
        %v343 = vmul.f32 %v290, %v262
        %v344 = vmul.f32 %v290, %v263
        %v345 = vmul.f32 %v290, %v264
        %v346 = vmul.f32 %v290, %v265
        %v347 = vmul.f32 %v290, %v266
        %v348 = vmul.f32 %v290, %v267
        %v349 = vmul.f32 %v290, %v268
        %v350 = vmul.f32 %v290, %v269
        %v351 = vmul.f32 %v290, %v270
        %v352 = vmul.f32 %v290, %v271
        %v353 = vmul.f32 %v290, %v272
        %v354 = vmul.f32 %v290, %v273
        %356 = vset.pattern.permute.xlu0 0
        %357 = vperm.xlu0 %356, %v274
        %v358 = vpop.permute.xlu0 %357
        %361 = vset.pattern.permute.xlu0 0
        %362 = vperm.xlu0 %361, %v275
        %v363 = vpop.permute.xlu0 %362
        %366 = vset.pattern.permute.xlu0 0
        %367 = vperm.xlu0 %366, %v276
        %v368 = vpop.permute.xlu0 %367
        %371 = vset.pattern.permute.xlu0 0
        %372 = vperm.xlu0 %371, %v277
        %v373 = vpop.permute.xlu0 %372
        %376 = vset.pattern.permute.xlu0 0
        %377 = vperm.xlu0 %376, %v278
        %v378 = vpop.permute.xlu0 %377
        %381 = vset.pattern.permute.xlu0 0
        %382 = vperm.xlu0 %381, %v279
        %v383 = vpop.permute.xlu0 %382
        %386 = vset.pattern.permute.xlu0 0
        %387 = vperm.xlu0 %386, %v280
        %v388 = vpop.permute.xlu0 %387
        %391 = vset.pattern.permute.xlu0 0
        %392 = vperm.xlu0 %391, %v281
        %v393 = vpop.permute.xlu0 %392
        %396 = vset.pattern.permute.xlu0 0
        %397 = vperm.xlu0 %396, %v282
        %v398 = vpop.permute.xlu0 %397
        %401 = vset.pattern.permute.xlu0 0
        %402 = vperm.xlu0 %401, %v283
        %v403 = vpop.permute.xlu0 %402
        %406 = vset.pattern.permute.xlu0 0
        %407 = vperm.xlu0 %406, %v284
        %v408 = vpop.permute.xlu0 %407
        %411 = vset.pattern.permute.xlu0 0
        %412 = vperm.xlu0 %411, %v285
        %v413 = vpop.permute.xlu0 %412
        %416 = vset.pattern.permute.xlu0 0
        %417 = vperm.xlu0 %416, %v286
        %v418 = vpop.permute.xlu0 %417
        %421 = vset.pattern.permute.xlu0 0
        %422 = vperm.xlu0 %421, %v287
        %v423 = vpop.permute.xlu0 %422
        %426 = vset.pattern.permute.xlu0 0
        %427 = vperm.xlu0 %426, %v288
        %v428 = vpop.permute.xlu0 %427
        %431 = vset.pattern.permute.xlu0 0
        %432 = vperm.xlu0 %431, %v289
        %v433 = vpop.permute.xlu0 %432
        %v435 = vadd.f32 %v291, %v358
        %v436 = vadd.f32 %v292, %v358
        %v437 = vadd.f32 %v293, %v358
        %v438 = vadd.f32 %v294, %v358
        %v439 = vadd.f32 %v295, %v363
        %v440 = vadd.f32 %v296, %v363
        %v441 = vadd.f32 %v297, %v363
        %v442 = vadd.f32 %v298, %v363
        %v443 = vadd.f32 %v299, %v368
        %v444 = vadd.f32 %v300, %v368
        %v445 = vadd.f32 %v301, %v368
        %v446 = vadd.f32 %v302, %v368
        %v447 = vadd.f32 %v303, %v373
        %v448 = vadd.f32 %v304, %v373
        %v449 = vadd.f32 %v305, %v373
        %v450 = vadd.f32 %v306, %v373
        %v451 = vadd.f32 %v307, %v378
        %v452 = vadd.f32 %v308, %v378
        %v453 = vadd.f32 %v309, %v378
        %v454 = vadd.f32 %v310, %v378
        %v455 = vadd.f32 %v311, %v383
        %v456 = vadd.f32 %v312, %v383
        %v457 = vadd.f32 %v313, %v383
        %v458 = vadd.f32 %v314, %v383
        %v459 = vadd.f32 %v315, %v388
        %v460 = vadd.f32 %v316, %v388
        %v461 = vadd.f32 %v317, %v388
        %v462 = vadd.f32 %v318, %v388
        %v463 = vadd.f32 %v319, %v393
        %v464 = vadd.f32 %v320, %v393
        %v465 = vadd.f32 %v321, %v393
        %v466 = vadd.f32 %v322, %v393
        %v467 = vadd.f32 %v323, %v398
        %v468 = vadd.f32 %v324, %v398
        %v469 = vadd.f32 %v325, %v398
        %v470 = vadd.f32 %v326, %v398
        %v471 = vadd.f32 %v327, %v403
        %v472 = vadd.f32 %v328, %v403
        %v473 = vadd.f32 %v329, %v403
        %v474 = vadd.f32 %v330, %v403
        %v475 = vadd.f32 %v331, %v408
        %v476 = vadd.f32 %v332, %v408
        %v477 = vadd.f32 %v333, %v408
        %v478 = vadd.f32 %v334, %v408
        %v479 = vadd.f32 %v335, %v413
        %v480 = vadd.f32 %v336, %v413
        %v481 = vadd.f32 %v337, %v413
        %v482 = vadd.f32 %v338, %v413
        %v483 = vadd.f32 %v339, %v418
        %v484 = vadd.f32 %v340, %v418
        %v485 = vadd.f32 %v341, %v418
        %v486 = vadd.f32 %v342, %v418
        %v487 = vadd.f32 %v343, %v423
        %v488 = vadd.f32 %v344, %v423
        %v489 = vadd.f32 %v345, %v423
        %v490 = vadd.f32 %v346, %v423
        %v491 = vadd.f32 %v347, %v428
        %v492 = vadd.f32 %v348, %v428
        %v493 = vadd.f32 %v349, %v428
        %v494 = vadd.f32 %v350, %v428
        %v495 = vadd.f32 %v351, %v433
        %v496 = vadd.f32 %v352, %v433
        %v497 = vadd.f32 %v353, %v433
        %v498 = vadd.f32 %v354, %v433
        %499 = vst [vmem:[%s198] sm:$0xff] %v435
        %500 = vst [vmem:[%s198 + $0x8] sm:$0xff] %v436
        %501 = vst [vmem:[%s198 + $0x10] sm:$0xff] %v437
        %502 = vst [vmem:[%s198 + $0x18] sm:$0xff] %v438
        %503 = vst [vmem:[%s198 + $0x20] sm:$0xff] %v439
        %504 = vst [vmem:[%s198 + $0x28] sm:$0xff] %v440
        %505 = vst [vmem:[%s198 + $0x30] sm:$0xff] %v441
        %506 = vst [vmem:[%s198 + $0x38] sm:$0xff] %v442
        %507 = vst [vmem:[%s198 + $0x40] sm:$0xff] %v443
        %508 = vst [vmem:[%s198 + $0x48] sm:$0xff] %v444
        %509 = vst [vmem:[%s198 + $0x50] sm:$0xff] %v445
        %510 = vst [vmem:[%s198 + $0x58] sm:$0xff] %v446
        %511 = vst [vmem:[%s198 + $0x60] sm:$0xff] %v447
        %512 = vst [vmem:[%s198 + $0x68] sm:$0xff] %v448
        %513 = vst [vmem:[%s198 + $0x70] sm:$0xff] %v449
        %514 = vst [vmem:[%s198 + $0x78] sm:$0xff] %v450
        %515 = vst [vmem:[%s198 + $0x80] sm:$0xff] %v451
        %516 = vst [vmem:[%s198 + $0x88] sm:$0xff] %v452
        %517 = vst [vmem:[%s198 + $0x90] sm:$0xff] %v453
        %518 = vst [vmem:[%s198 + $0x98] sm:$0xff] %v454
        %519 = vst [vmem:[%s198 + $0xa0] sm:$0xff] %v455
        %520 = vst [vmem:[%s198 + $0xa8] sm:$0xff] %v456
        %521 = vst [vmem:[%s198 + $0xb0] sm:$0xff] %v457
        %522 = vst [vmem:[%s198 + $0xb8] sm:$0xff] %v458
        %523 = vst [vmem:[%s198 + $0xc0] sm:$0xff] %v459
        %524 = vst [vmem:[%s198 + $0xc8] sm:$0xff] %v460
        %525 = vst [vmem:[%s198 + $0xd0] sm:$0xff] %v461
        %526 = vst [vmem:[%s198 + $0xd8] sm:$0xff] %v462
        %527 = vst [vmem:[%s198 + $0xe0] sm:$0xff] %v463
        %528 = vst [vmem:[%s198 + $0xe8] sm:$0xff] %v464
        %529 = vst [vmem:[%s198 + $0xf0] sm:$0xff] %v465
        %530 = vst [vmem:[%s198 + $0xf8] sm:$0xff] %v466
        %531 = vst [vmem:[%s198 + $0x100] sm:$0xff] %v467
        %532 = vst [vmem:[%s198 + $0x108] sm:$0xff] %v468
        %533 = vst [vmem:[%s198 + $0x110] sm:$0xff] %v469
        %534 = vst [vmem:[%s198 + $0x118] sm:$0xff] %v470
        %535 = vst [vmem:[%s198 + $0x120] sm:$0xff] %v471
        %536 = vst [vmem:[%s198 + $0x128] sm:$0xff] %v472
        %537 = vst [vmem:[%s198 + $0x130] sm:$0xff] %v473
        %538 = vst [vmem:[%s198 + $0x138] sm:$0xff] %v474
        %539 = vst [vmem:[%s198 + $0x140] sm:$0xff] %v475
        %540 = vst [vmem:[%s198 + $0x148] sm:$0xff] %v476
        %541 = vst [vmem:[%s198 + $0x150] sm:$0xff] %v477
        %542 = vst [vmem:[%s198 + $0x158] sm:$0xff] %v478
        %543 = vst [vmem:[%s198 + $0x160] sm:$0xff] %v479
        %544 = vst [vmem:[%s198 + $0x168] sm:$0xff] %v480
        %545 = vst [vmem:[%s198 + $0x170] sm:$0xff] %v481
        %546 = vst [vmem:[%s198 + $0x178] sm:$0xff] %v482
        %547 = vst [vmem:[%s198 + $0x180] sm:$0xff] %v483
        %548 = vst [vmem:[%s198 + $0x188] sm:$0xff] %v484
        %549 = vst [vmem:[%s198 + $0x190] sm:$0xff] %v485
        %550 = vst [vmem:[%s198 + $0x198] sm:$0xff] %v486
        %551 = vst [vmem:[%s198 + $0x1a0] sm:$0xff] %v487
        %552 = vst [vmem:[%s198 + $0x1a8] sm:$0xff] %v488
        %553 = vst [vmem:[%s198 + $0x1b0] sm:$0xff] %v489
        %554 = vst [vmem:[%s198 + $0x1b8] sm:$0xff] %v490
        %555 = vst [vmem:[%s198 + $0x1c0] sm:$0xff] %v491
        %556 = vst [vmem:[%s198 + $0x1c8] sm:$0xff] %v492
        %557 = vst [vmem:[%s198 + $0x1d0] sm:$0xff] %v493
        %558 = vst [vmem:[%s198 + $0x1d8] sm:$0xff] %v494
        %559 = vst [vmem:[%s198 + $0x1e0] sm:$0xff] %v495
        %560 = vst [vmem:[%s198 + $0x1e8] sm:$0xff] %v496
        %561 = vst [vmem:[%s198 + $0x1f0] sm:$0xff] %v497
        %562 = vst [vmem:[%s198 + $0x1f8] sm:$0xff] %v498
        %s563 = sand.u32 %s97, 1
        %s564 = scalar_lea.sflag [#allocation6], %s563
        %s565 = sand.u32 %s97, 1
        %s566 = smul.addr %s565, 512
        %s567 = scalar_lea.vmem [#allocation7], %s566
        // Predicated region
        $region33: #{tpu_custom_call.1} parent=27 // pred_check
          %p568 = pneg %p107
        $region34: #{tpu_custom_call.1} parent=27 // pred_check_branch
          %570 = sbr.rel (%p568) target = $region36
        $region35: #{tpu_custom_call.1} parent=27 // pred_region
          %s571 = smul.u32 16, %s25
          %s572 = smul.u32 4, %s26
          %s574 = ssub.s32 8192, 8192
          %575 = vsyncadd %s564, %s574
          %s576 = smul.addr %s571, 4
          %s577 = sadd.s32 %s572, %s576
          %s578 = smul.addr %s577, 128
          %s579 = scalar_lea.hbm %s3, %s578
          %s580 = sshll.u32 %s567, 4
          %s581 = int_to_ptr.vmem [resolvable:$true] %s580
          %586 = dma.vmem_to_hbm [thread:$0]  %s581, 8192, %s579, %s564, 512, 512, 32
        $region36: #{tpu_custom_call.1} parent=27 // pred_fallthru
          _
      $region28: #{tpu_custom_call.1} parent=5 // pred_fallthru
        _
      %p587 = scmp.le.s32.totalorder 2, %s16
      // Predicated region
      $region37: #{tpu_custom_call.1} parent=5 // pred_check
        %p588 = pneg %p587
      $region38: #{tpu_custom_call.1} parent=5 // pred_check_branch
        %590 = sbr.rel (%p588) target = $region40
      $region39: #{tpu_custom_call.1} parent=5 // pred_region
        %s591 = ssub.s32 %s16, 2
        // Predicated region
        $region41: #{tpu_custom_call.1} parent=39 // pred_check
          %p592 = pneg %p113
        $region42: #{tpu_custom_call.1} parent=39 // pred_check_branch
          %594 = sbr.rel (%p592) target = $region44
        $region43: #{tpu_custom_call.1} parent=39 // pred_region
          %s595 = sand.u32 %s98, 1
          %s596 = scalar_lea.sflag [#allocation6], %s595
          %s597 = sand.u32 %s98, 1
          %s598 = smul.addr %s597, 512
          %s599 = scalar_lea.vmem [#allocation7], %s598
          %600 = dma.done %s596, 8192
        $region44: #{tpu_custom_call.1} parent=39 // pred_fallthru
          _
      $region40: #{tpu_custom_call.1} parent=5 // pred_fallthru
        _
    $region6: #{tpu_custom_call.1} parent=1 // loop_footer
      %s20 = sadd.s32 1, %s16
    $region7: #{tpu_custom_call.1} parent=1 // loop_footer_branch
      %15 = sbr.rel target = $region3
    $region8: #{tpu_custom_call.1} parent=1 // loop_exit
      _
    %601 = vsyncpa [#allocation5], 1
    %s602 = scalar_lea.sflag [#allocation5], 1
    %603 = vsyncpa %s602, 1
    %604 = vsyncpa [#allocation6], 1
    %s605 = scalar_lea.sflag [#allocation6], 1
    %606 = vsyncpa %s605, 1

</llo_original>
